<compile_context>
chip_gen: v5e
topology: v5e:2x2
jax: 0.10.0
libtpu: 0.0.40
codegen_flags: <defaults>
</compile_context>

<pallas_src>
import jax
import jax.numpy as jnp
from jax import lax
from jax.experimental import pallas as pl
from jax.experimental.pallas import tpu as pltpu

LANE = 128


def lstm_lm_kernel(gx_ref, whh_ref, wout_ref, bout_ref, out_ref, h_scr, c_scr):
    """One grid step processes a tile of Tt timesteps.

    gx_ref  : (Tt, B, Gp) bf16 -- x_t @ W_ih + (b_ih + b_hh); gate columns packed
                                  [i|f|g|o] in [0, 4H), zero-padded up to Gp.
    whh_ref : (H,  Gp)    bf16 -- recurrent weights, same column packing.
    wout_ref: (H,  Cp)    bf16 -- hidden2tag weights (zero-padded columns).
    bout_ref: (1,  Cp)    f32
    out_ref : (B,  Cp)    f32  -- written once, on the last grid step.
    h_scr/c_scr: (B, H)   f32  -- LSTM state, carried across grid steps.
    """
    t_blk = pl.program_id(0)
    Tt = gx_ref.shape[0]
    H = whh_ref.shape[0]

    @pl.when(t_blk == 0)
    def _():
        h_scr[...] = jnp.zeros_like(h_scr)
        c_scr[...] = jnp.zeros_like(c_scr)

    def step(t, carry):
        # Only the recurrent projection sits on the serial path; the input
        # projection + bias were folded into gx outside the loop.
        # TODO(synk): when Gp spans several 128-lane MXU column tiles, split this
        # dot into i/f/g vs o column groups so EUP gate math overlaps the MXU drain.
        gates = gx_ref[t].astype(jnp.float32) + jnp.dot(
            h_scr[...].astype(whh_ref.dtype), whh_ref[...],
            preferred_element_type=jnp.float32)                 # (B, Gp) f32

        # PyTorch LSTM gate order: i, f, g, o.
        i_g = jax.nn.sigmoid(gates[:, 0 * H:1 * H])
        f_g = jax.nn.sigmoid(gates[:, 1 * H:2 * H])
        g_g = jnp.tanh(gates[:, 2 * H:3 * H])
        o_g = jax.nn.sigmoid(gates[:, 3 * H:4 * H])

        c_new = f_g * c_scr[...] + i_g * g_g
        h_scr[...] = o_g * jnp.tanh(c_new)
        c_scr[...] = c_new
        return carry

    # Per-invocation trip count is the (small) time tile -> full unroll is cheap
    # and gives the LLO scheduler cross-step MXU/EUP overlap.
    lax.fori_loop(0, Tt, step, 0, unroll=True)

    @pl.when(t_blk == pl.num_programs(0) - 1)
    def _():
        out_ref[...] = (jnp.dot(h_scr[...].astype(wout_ref.dtype), wout_ref[...],
                                preferred_element_type=jnp.float32)
                        + bout_ref[...])


def language_module_forward(token_ids, emb_table, w_ih, w_hh, b_gates,
                            w_out, b_out, *, t_tile=4):
    """token_ids: (B, T) int32.
       emb_table: (VOCAB, E); w_ih: (E, 4H); w_hh: (H, 4H); b_gates: (4H,)
       w_out: (H, C); b_out: (C,).  Returns logits (B, C) float32."""
    B, T = token_ids.shape
    E = emb_table.shape[1]
    H = w_hh.shape[0]
    C = w_out.shape[1]
    G = 4 * H
    Gp = ((G + LANE - 1) // LANE) * LANE     # gate columns padded to a lane multiple
    Cp = ((C + LANE - 1) // LANE) * LANE     # output columns padded (lane-dense store)

    # Pick a time tile that divides T.
    t_tile = max(1, min(t_tile, T))
    while T % t_tile:
        t_tile -= 1
    n_t = T // t_tile

    # --- input projection done once, outside the recurrence ------------------
    # Gather the B*T embeddings first (scales with B*T, not VOCAB), then one
    # (T*B, E) @ (E, 4H) matmul builds the per-step gate inputs, time-major.
    emb_tm = jnp.take(emb_table, token_ids.T, axis=0)                  # (T, B, E)
    gx = (jnp.dot(emb_tm.reshape(T * B, E), w_ih,
                  precision=lax.Precision.HIGHEST)
          + b_gates[None, :])                                          # (T*B, 4H) f32

    # Pad gate columns to Gp and stream in bf16 (halves HBM/VMEM traffic).
    gx_p = jnp.zeros((T * B, Gp), jnp.float32).at[:, :G].set(gx)
    gx_p = gx_p.reshape(T, B, Gp).astype(jnp.bfloat16)

    w_hh_p = (jnp.zeros((H, Gp), jnp.float32).at[:, :G].set(w_hh)
              .astype(jnp.bfloat16))                                   # (H, Gp)
    w_out_p = (jnp.zeros((H, Cp), jnp.float32).at[:, :C].set(w_out)
               .astype(jnp.bfloat16))                                  # (H, Cp)
    b_out_p = jnp.zeros((1, Cp), jnp.float32).at[0, :C].set(b_out)     # (1, Cp)

    grid_spec = pltpu.PrefetchScalarGridSpec(
        num_scalar_prefetch=0,
        grid=(n_t,),
        in_specs=[
            pl.BlockSpec((t_tile, B, Gp), lambda t: (t, 0, 0)),   # streamed over T
            pl.BlockSpec((H, Gp), lambda t: (0, 0)),              # resident
            pl.BlockSpec((H, Cp), lambda t: (0, 0)),              # resident
            pl.BlockSpec((1, Cp), lambda t: (0, 0)),              # resident
        ],
        out_specs=pl.BlockSpec((B, Cp), lambda t: (0, 0)),        # resident, written last
        scratch_shapes=[
            pltpu.VMEM((B, H), jnp.float32),   # h_t
            pltpu.VMEM((B, H), jnp.float32),   # c_t
        ],
    )

    out_p = pl.pallas_call(
        lstm_lm_kernel,
        out_shape=jax.ShapeDtypeStruct((B, Cp), jnp.float32),
        grid_spec=grid_spec,
        compiler_params=pltpu.CompilerParams(
            dimension_semantics=("arbitrary",)),   # T axis is a serial recurrence
    )(gx_p, w_hh_p, w_out_p, b_out_p)

    return out_p[:, :C]


def reference_forward(token_ids, emb_table, w_ih, w_hh, b_gates, w_out, b_out):
    """Pure-JAX f32 reference matching PyTorch LSTM semantics."""
    B, T = token_ids.shape
    H = w_hh.shape[0]
    emb = jnp.take(emb_table, token_ids, axis=0)           # (B, T, E)
    h = jnp.zeros((B, H), jnp.float32)
    c = jnp.zeros((B, H), jnp.float32)
    for t in range(T):
        gates = emb[:, t, :] @ w_ih + h @ w_hh + b_gates
        i = jax.nn.sigmoid(gates[:, 0 * H:1 * H])
        f = jax.nn.sigmoid(gates[:, 1 * H:2 * H])
        g = jnp.tanh(gates[:, 2 * H:3 * H])
        o = jax.nn.sigmoid(gates[:, 3 * H:4 * H])
        c = f * c + i * g
        h = o * jnp.tanh(c)
    return h @ w_out + b_out


if __name__ == "__main__":
    # Small, self-consistent sizes.
    VOCAB = 64        # rows of weights_matrix
    E = 32            # embedding_dim
    H = 32            # hidden_dim
    C = 16            # target_size
    B = 8             # batch
    T = 8             # sequence length

    key = jax.random.PRNGKey(0)
    k_emb, k_wih, k_whh, k_bih, k_bhh, k_wo, k_bo, k_ids = jax.random.split(key, 8)

    # Deterministic synthetic parameters (mimicking PyTorch init scales).
    emb_table = jax.random.normal(k_emb, (VOCAB, E), jnp.float32)          # weights_matrix
    s = 1.0 / jnp.sqrt(jnp.float32(H))
    w_ih = jax.random.uniform(k_wih, (E, 4 * H), jnp.float32, -s, s)       # weight_ih_l0.T
    w_hh = jax.random.uniform(k_whh, (H, 4 * H), jnp.float32, -s, s)       # weight_hh_l0.T
    b_ih = jax.random.uniform(k_bih, (4 * H,), jnp.float32, -s, s)
    b_hh = jax.random.uniform(k_bhh, (4 * H,), jnp.float32, -s, s)
    b_gates = b_ih + b_hh                                                  # combined LSTM bias
    w_out = jax.random.uniform(k_wo, (H, C), jnp.float32, -s, s)           # hidden2tag.weight.T
    b_out = jax.random.uniform(k_bo, (C,), jnp.float32, -s, s)

    token_ids = jax.random.randint(k_ids, (B, T), 0, VOCAB, jnp.int32)

    logits = language_module_forward(token_ids, emb_table, w_ih, w_hh,
                                     b_gates, w_out, b_out, t_tile=4)
    jax.block_until_ready(logits)
    assert logits.shape == (B, C) and logits.dtype == jnp.float32

    # Sanity check vs pure-JAX f32 reference (loose tol: bf16 gx / weights / h cast).
    ref = reference_forward(token_ids, emb_table, w_ih, w_hh, b_gates,
                            w_out, b_out)
    err = float(jnp.max(jnp.abs(logits - ref)))
    assert err < 7.5e-2, f"max abs err {err}"

    print("KERNEL_OK")
</pallas_src>

<mosaic_0001>
module attributes {stable_mosaic.version = 11 : i64} {
  func.func @lstm_lm_kernel(%arg0: i32, %arg1: memref<4x8x128xbf16, #tpu.memory_space<vmem>>, %arg2: memref<32x128xbf16, #tpu.memory_space<vmem>>, %arg3: memref<32x128xbf16, #tpu.memory_space<vmem>>, %arg4: memref<1x128xf32, #tpu.memory_space<vmem>>, %arg5: memref<8x128xf32, #tpu.memory_space<vmem>>, %arg6: memref<8x32xf32, #tpu.memory_space<vmem>>, %arg7: memref<8x32xf32, #tpu.memory_space<vmem>>) attributes {dimension_semantics = [#tpu.dimension_semantics<arbitrary>], iteration_bounds = array<i64: 2>, scalar_prefetch = 0 : i64, scratch_operands = 2 : i64, tpu.core_type = #tpu.core_type<tc>, window_params = [{transform_indices = @transform_0, window_bounds = array<i64: 4, 8, 128>}, {pipeline_mode = #tpu.pipeline_mode<synchronous>, transform_indices = @transform_1, window_bounds = array<i64: 32, 128>}, {pipeline_mode = #tpu.pipeline_mode<synchronous>, transform_indices = @transform_2, window_bounds = array<i64: 32, 128>}, {pipeline_mode = #tpu.pipeline_mode<synchronous>, transform_indices = @transform_3, window_bounds = array<i64: 1, 128>}, {pipeline_mode = #tpu.pipeline_mode<synchronous>, transform_indices = @transform_4, window_bounds = array<i64: 8, 128>}]} {
    %c0_i32 = arith.constant 0 : i32
    %0 = arith.cmpi eq, %arg0, %c0_i32 : i32
    %1 = arith.extui %0 : i1 to i32
    %c0_i32_0 = arith.constant 0 : i32
    %2 = arith.cmpi ne, %1, %c0_i32_0 : i32
    scf.if %2 {
      %cst_66 = arith.constant 0.000000e+00 : f32
      %154 = vector.broadcast %cst_66 : f32 to vector<8x32xf32>
      %c0_67 = arith.constant 0 : index
      %c0_68 = arith.constant 0 : index
      %155 = vector.load %arg6[%c0_67, %c0_68] : memref<8x32xf32, #tpu.memory_space<vmem>>, vector<8x32xf32>
      tpu.vector_store %arg6[%c0_67, %c0_68], %154 {strides = array<i32>} : memref<8x32xf32, #tpu.memory_space<vmem>>, vector<8x32xf32>,
      %cst_69 = arith.constant 0.000000e+00 : f32
      %156 = vector.broadcast %cst_69 : f32 to vector<8x32xf32>
      %c0_70 = arith.constant 0 : index
      %c0_71 = arith.constant 0 : index
      %157 = vector.load %arg7[%c0_70, %c0_71] : memref<8x32xf32, #tpu.memory_space<vmem>>, vector<8x32xf32>
      tpu.vector_store %arg7[%c0_70, %c0_71], %156 {strides = array<i32>} : memref<8x32xf32, #tpu.memory_space<vmem>>, vector<8x32xf32>,
    } else {
    }
    %c0_i32_1 = arith.constant 0 : i32
    %3 = arith.index_cast %c0_i32_1 : i32 to index
    %c0 = arith.constant 0 : index
    %c0_2 = arith.constant 0 : index
    %4 = vector.load %arg1[%3, %c0, %c0_2] : memref<4x8x128xbf16, #tpu.memory_space<vmem>>, vector<1x8x128xbf16>
    %5 = vector.shape_cast %4 : vector<1x8x128xbf16> to vector<8x128xbf16>
    %6 = arith.extf %5 : vector<8x128xbf16> to vector<8x128xf32>
    %c0_3 = arith.constant 0 : index
    %c0_4 = arith.constant 0 : index
    %7 = vector.load %arg6[%c0_3, %c0_4] : memref<8x32xf32, #tpu.memory_space<vmem>>, vector<8x32xf32>
    %8 = arith.truncf %7 : vector<8x32xf32> to vector<8x32xbf16>
    %c0_5 = arith.constant 0 : index
    %c0_6 = arith.constant 0 : index
    %9 = vector.load %arg2[%c0_5, %c0_6] : memref<32x128xbf16, #tpu.memory_space<vmem>>, vector<32x128xbf16>
    %cst = arith.constant dense<0.000000e+00> : vector<8x128xf32>
    %10 = tpu.matmul %8, %9, %cst {dimension_numbers = #tpu.dot_dimension_numbers<[1], [0], [0], [1], [0, 0, 1, 1], [], []>} : vector<8x32xbf16>, vector<32x128xbf16>, vector<8x128xf32> -> vector<8x128xf32>
    %11 = arith.addf %6, %10 : vector<8x128xf32>
    %12 = vector.extract_strided_slice %11 {offsets = [0, 0], sizes = [8, 32], strides = [1, 1]} : vector<8x128xf32> to vector<8x32xf32>
    %13 = arith.negf %12 : vector<8x32xf32>
    %14 = math.exp %13 : vector<8x32xf32>
    %cst_7 = arith.constant 1.000000e+00 : f32
    %15 = vector.broadcast %cst_7 : f32 to vector<8x32xf32>
    %16 = arith.addf %15, %14 : vector<8x32xf32>
    %17 = arith.divf %15, %16 : vector<8x32xf32>
    %18 = vector.extract_strided_slice %11 {offsets = [0, 32], sizes = [8, 32], strides = [1, 1]} : vector<8x128xf32> to vector<8x32xf32>
    %19 = arith.negf %18 : vector<8x32xf32>
    %20 = math.exp %19 : vector<8x32xf32>
    %cst_8 = arith.constant 1.000000e+00 : f32
    %21 = vector.broadcast %cst_8 : f32 to vector<8x32xf32>
    %22 = arith.addf %21, %20 : vector<8x32xf32>
    %23 = arith.divf %21, %22 : vector<8x32xf32>
    %24 = vector.extract_strided_slice %11 {offsets = [0, 64], sizes = [8, 32], strides = [1, 1]} : vector<8x128xf32> to vector<8x32xf32>
    %25 = math.tanh %24 : vector<8x32xf32>
    %26 = vector.extract_strided_slice %11 {offsets = [0, 96], sizes = [8, 32], strides = [1, 1]} : vector<8x128xf32> to vector<8x32xf32>
    %27 = arith.negf %26 : vector<8x32xf32>
    %28 = math.exp %27 : vector<8x32xf32>
    %cst_9 = arith.constant 1.000000e+00 : f32
    %29 = vector.broadcast %cst_9 : f32 to vector<8x32xf32>
    %30 = arith.addf %29, %28 : vector<8x32xf32>
    %31 = arith.divf %29, %30 : vector<8x32xf32>
    %c0_10 = arith.constant 0 : index
    %c0_11 = arith.constant 0 : index
    %32 = vector.load %arg7[%c0_10, %c0_11] : memref<8x32xf32, #tpu.memory_space<vmem>>, vector<8x32xf32>
    %33 = arith.mulf %23, %32 : vector<8x32xf32>
    %34 = arith.mulf %17, %25 : vector<8x32xf32>
    %35 = arith.addf %33, %34 : vector<8x32xf32>
    %36 = math.tanh %35 : vector<8x32xf32>
    %37 = arith.mulf %31, %36 : vector<8x32xf32>
    %c0_12 = arith.constant 0 : index
    %c0_13 = arith.constant 0 : index
    %38 = vector.load %arg6[%c0_12, %c0_13] : memref<8x32xf32, #tpu.memory_space<vmem>>, vector<8x32xf32>
    tpu.vector_store %arg6[%c0_12, %c0_13], %37 {strides = array<i32>} : memref<8x32xf32, #tpu.memory_space<vmem>>, vector<8x32xf32>,
    %c0_14 = arith.constant 0 : index
    %c0_15 = arith.constant 0 : index
    %39 = vector.load %arg7[%c0_14, %c0_15] : memref<8x32xf32, #tpu.memory_space<vmem>>, vector<8x32xf32>
    tpu.vector_store %arg7[%c0_14, %c0_15], %35 {strides = array<i32>} : memref<8x32xf32, #tpu.memory_space<vmem>>, vector<8x32xf32>,
    %c1_i32 = arith.constant 1 : i32
    %40 = arith.index_cast %c1_i32 : i32 to index
    %c0_16 = arith.constant 0 : index
    %c0_17 = arith.constant 0 : index
    %41 = vector.load %arg1[%40, %c0_16, %c0_17] : memref<4x8x128xbf16, #tpu.memory_space<vmem>>, vector<1x8x128xbf16>
    %42 = vector.shape_cast %41 : vector<1x8x128xbf16> to vector<8x128xbf16>
    %43 = arith.extf %42 : vector<8x128xbf16> to vector<8x128xf32>
    %c0_18 = arith.constant 0 : index
    %c0_19 = arith.constant 0 : index
    %44 = vector.load %arg6[%c0_18, %c0_19] : memref<8x32xf32, #tpu.memory_space<vmem>>, vector<8x32xf32>
    %45 = arith.truncf %44 : vector<8x32xf32> to vector<8x32xbf16>
    %c0_20 = arith.constant 0 : index
    %c0_21 = arith.constant 0 : index
    %46 = vector.load %arg2[%c0_20, %c0_21] : memref<32x128xbf16, #tpu.memory_space<vmem>>, vector<32x128xbf16>
    %cst_22 = arith.constant dense<0.000000e+00> : vector<8x128xf32>
    %47 = tpu.matmul %45, %46, %cst_22 {dimension_numbers = #tpu.dot_dimension_numbers<[1], [0], [0], [1], [0, 0, 1, 1], [], []>} : vector<8x32xbf16>, vector<32x128xbf16>, vector<8x128xf32> -> vector<8x128xf32>
    %48 = arith.addf %43, %47 : vector<8x128xf32>
    %49 = vector.extract_strided_slice %48 {offsets = [0, 0], sizes = [8, 32], strides = [1, 1]} : vector<8x128xf32> to vector<8x32xf32>
    %50 = arith.negf %49 : vector<8x32xf32>
    %51 = math.exp %50 : vector<8x32xf32>
    %cst_23 = arith.constant 1.000000e+00 : f32
    %52 = vector.broadcast %cst_23 : f32 to vector<8x32xf32>
    %53 = arith.addf %52, %51 : vector<8x32xf32>
    %54 = arith.divf %52, %53 : vector<8x32xf32>
    %55 = vector.extract_strided_slice %48 {offsets = [0, 32], sizes = [8, 32], strides = [1, 1]} : vector<8x128xf32> to vector<8x32xf32>
    %56 = arith.negf %55 : vector<8x32xf32>
    %57 = math.exp %56 : vector<8x32xf32>
    %cst_24 = arith.constant 1.000000e+00 : f32
    %58 = vector.broadcast %cst_24 : f32 to vector<8x32xf32>
    %59 = arith.addf %58, %57 : vector<8x32xf32>
    %60 = arith.divf %58, %59 : vector<8x32xf32>
    %61 = vector.extract_strided_slice %48 {offsets = [0, 64], sizes = [8, 32], strides = [1, 1]} : vector<8x128xf32> to vector<8x32xf32>
    %62 = math.tanh %61 : vector<8x32xf32>
    %63 = vector.extract_strided_slice %48 {offsets = [0, 96], sizes = [8, 32], strides = [1, 1]} : vector<8x128xf32> to vector<8x32xf32>
    %64 = arith.negf %63 : vector<8x32xf32>
    %65 = math.exp %64 : vector<8x32xf32>
    %cst_25 = arith.constant 1.000000e+00 : f32
    %66 = vector.broadcast %cst_25 : f32 to vector<8x32xf32>
    %67 = arith.addf %66, %65 : vector<8x32xf32>
    %68 = arith.divf %66, %67 : vector<8x32xf32>
    %c0_26 = arith.constant 0 : index
    %c0_27 = arith.constant 0 : index
    %69 = vector.load %arg7[%c0_26, %c0_27] : memref<8x32xf32, #tpu.memory_space<vmem>>, vector<8x32xf32>
    %70 = arith.mulf %60, %69 : vector<8x32xf32>
    %71 = arith.mulf %54, %62 : vector<8x32xf32>
    %72 = arith.addf %70, %71 : vector<8x32xf32>
    %73 = math.tanh %72 : vector<8x32xf32>
    %74 = arith.mulf %68, %73 : vector<8x32xf32>
    %c0_28 = arith.constant 0 : index
    %c0_29 = arith.constant 0 : index
    %75 = vector.load %arg6[%c0_28, %c0_29] : memref<8x32xf32, #tpu.memory_space<vmem>>, vector<8x32xf32>
    tpu.vector_store %arg6[%c0_28, %c0_29], %74 {strides = array<i32>} : memref<8x32xf32, #tpu.memory_space<vmem>>, vector<8x32xf32>,
    %c0_30 = arith.constant 0 : index
    %c0_31 = arith.constant 0 : index
    %76 = vector.load %arg7[%c0_30, %c0_31] : memref<8x32xf32, #tpu.memory_space<vmem>>, vector<8x32xf32>
    tpu.vector_store %arg7[%c0_30, %c0_31], %72 {strides = array<i32>} : memref<8x32xf32, #tpu.memory_space<vmem>>, vector<8x32xf32>,
    %c2_i32 = arith.constant 2 : i32
    %77 = arith.index_cast %c2_i32 : i32 to index
    %c0_32 = arith.constant 0 : index
    %c0_33 = arith.constant 0 : index
    %78 = vector.load %arg1[%77, %c0_32, %c0_33] : memref<4x8x128xbf16, #tpu.memory_space<vmem>>, vector<1x8x128xbf16>
    %79 = vector.shape_cast %78 : vector<1x8x128xbf16> to vector<8x128xbf16>
    %80 = arith.extf %79 : vector<8x128xbf16> to vector<8x128xf32>
    %c0_34 = arith.constant 0 : index
    %c0_35 = arith.constant 0 : index
    %81 = vector.load %arg6[%c0_34, %c0_35] : memref<8x32xf32, #tpu.memory_space<vmem>>, vector<8x32xf32>
    %82 = arith.truncf %81 : vector<8x32xf32> to vector<8x32xbf16>
    %c0_36 = arith.constant 0 : index
    %c0_37 = arith.constant 0 : index
    %83 = vector.load %arg2[%c0_36, %c0_37] : memref<32x128xbf16, #tpu.memory_space<vmem>>, vector<32x128xbf16>
    %cst_38 = arith.constant dense<0.000000e+00> : vector<8x128xf32>
    %84 = tpu.matmul %82, %83, %cst_38 {dimension_numbers = #tpu.dot_dimension_numbers<[1], [0], [0], [1], [0, 0, 1, 1], [], []>} : vector<8x32xbf16>, vector<32x128xbf16>, vector<8x128xf32> -> vector<8x128xf32>
    %85 = arith.addf %80, %84 : vector<8x128xf32>
    %86 = vector.extract_strided_slice %85 {offsets = [0, 0], sizes = [8, 32], strides = [1, 1]} : vector<8x128xf32> to vector<8x32xf32>
    %87 = arith.negf %86 : vector<8x32xf32>
    %88 = math.exp %87 : vector<8x32xf32>
    %cst_39 = arith.constant 1.000000e+00 : f32
    %89 = vector.broadcast %cst_39 : f32 to vector<8x32xf32>
    %90 = arith.addf %89, %88 : vector<8x32xf32>
    %91 = arith.divf %89, %90 : vector<8x32xf32>
    %92 = vector.extract_strided_slice %85 {offsets = [0, 32], sizes = [8, 32], strides = [1, 1]} : vector<8x128xf32> to vector<8x32xf32>
    %93 = arith.negf %92 : vector<8x32xf32>
    %94 = math.exp %93 : vector<8x32xf32>
    %cst_40 = arith.constant 1.000000e+00 : f32
    %95 = vector.broadcast %cst_40 : f32 to vector<8x32xf32>
    %96 = arith.addf %95, %94 : vector<8x32xf32>
    %97 = arith.divf %95, %96 : vector<8x32xf32>
    %98 = vector.extract_strided_slice %85 {offsets = [0, 64], sizes = [8, 32], strides = [1, 1]} : vector<8x128xf32> to vector<8x32xf32>
    %99 = math.tanh %98 : vector<8x32xf32>
    %100 = vector.extract_strided_slice %85 {offsets = [0, 96], sizes = [8, 32], strides = [1, 1]} : vector<8x128xf32> to vector<8x32xf32>
    %101 = arith.negf %100 : vector<8x32xf32>
    %102 = math.exp %101 : vector<8x32xf32>
    %cst_41 = arith.constant 1.000000e+00 : f32
    %103 = vector.broadcast %cst_41 : f32 to vector<8x32xf32>
    %104 = arith.addf %103, %102 : vector<8x32xf32>
    %105 = arith.divf %103, %104 : vector<8x32xf32>
    %c0_42 = arith.constant 0 : index
    %c0_43 = arith.constant 0 : index
    %106 = vector.load %arg7[%c0_42, %c0_43] : memref<8x32xf32, #tpu.memory_space<vmem>>, vector<8x32xf32>
    %107 = arith.mulf %97, %106 : vector<8x32xf32>
    %108 = arith.mulf %91, %99 : vector<8x32xf32>
    %109 = arith.addf %107, %108 : vector<8x32xf32>
    %110 = math.tanh %109 : vector<8x32xf32>
    %111 = arith.mulf %105, %110 : vector<8x32xf32>
    %c0_44 = arith.constant 0 : index
    %c0_45 = arith.constant 0 : index
    %112 = vector.load %arg6[%c0_44, %c0_45] : memref<8x32xf32, #tpu.memory_space<vmem>>, vector<8x32xf32>
    tpu.vector_store %arg6[%c0_44, %c0_45], %111 {strides = array<i32>} : memref<8x32xf32, #tpu.memory_space<vmem>>, vector<8x32xf32>,
    %c0_46 = arith.constant 0 : index
    %c0_47 = arith.constant 0 : index
    %113 = vector.load %arg7[%c0_46, %c0_47] : memref<8x32xf32, #tpu.memory_space<vmem>>, vector<8x32xf32>
    tpu.vector_store %arg7[%c0_46, %c0_47], %109 {strides = array<i32>} : memref<8x32xf32, #tpu.memory_space<vmem>>, vector<8x32xf32>,
    %c3_i32 = arith.constant 3 : i32
    %114 = arith.index_cast %c3_i32 : i32 to index
    %c0_48 = arith.constant 0 : index
    %c0_49 = arith.constant 0 : index
    %115 = vector.load %arg1[%114, %c0_48, %c0_49] : memref<4x8x128xbf16, #tpu.memory_space<vmem>>, vector<1x8x128xbf16>
    %116 = vector.shape_cast %115 : vector<1x8x128xbf16> to vector<8x128xbf16>
    %117 = arith.extf %116 : vector<8x128xbf16> to vector<8x128xf32>
    %c0_50 = arith.constant 0 : index
    %c0_51 = arith.constant 0 : index
    %118 = vector.load %arg6[%c0_50, %c0_51] : memref<8x32xf32, #tpu.memory_space<vmem>>, vector<8x32xf32>
    %119 = arith.truncf %118 : vector<8x32xf32> to vector<8x32xbf16>
    %c0_52 = arith.constant 0 : index
    %c0_53 = arith.constant 0 : index
    %120 = vector.load %arg2[%c0_52, %c0_53] : memref<32x128xbf16, #tpu.memory_space<vmem>>, vector<32x128xbf16>
    %cst_54 = arith.constant dense<0.000000e+00> : vector<8x128xf32>
    %121 = tpu.matmul %119, %120, %cst_54 {dimension_numbers = #tpu.dot_dimension_numbers<[1], [0], [0], [1], [0, 0, 1, 1], [], []>} : vector<8x32xbf16>, vector<32x128xbf16>, vector<8x128xf32> -> vector<8x128xf32>
    %122 = arith.addf %117, %121 : vector<8x128xf32>
    %123 = vector.extract_strided_slice %122 {offsets = [0, 0], sizes = [8, 32], strides = [1, 1]} : vector<8x128xf32> to vector<8x32xf32>
    %124 = arith.negf %123 : vector<8x32xf32>
    %125 = math.exp %124 : vector<8x32xf32>
    %cst_55 = arith.constant 1.000000e+00 : f32
    %126 = vector.broadcast %cst_55 : f32 to vector<8x32xf32>
    %127 = arith.addf %126, %125 : vector<8x32xf32>
    %128 = arith.divf %126, %127 : vector<8x32xf32>
    %129 = vector.extract_strided_slice %122 {offsets = [0, 32], sizes = [8, 32], strides = [1, 1]} : vector<8x128xf32> to vector<8x32xf32>
    %130 = arith.negf %129 : vector<8x32xf32>
    %131 = math.exp %130 : vector<8x32xf32>
    %cst_56 = arith.constant 1.000000e+00 : f32
    %132 = vector.broadcast %cst_56 : f32 to vector<8x32xf32>
    %133 = arith.addf %132, %131 : vector<8x32xf32>
    %134 = arith.divf %132, %133 : vector<8x32xf32>
    %135 = vector.extract_strided_slice %122 {offsets = [0, 64], sizes = [8, 32], strides = [1, 1]} : vector<8x128xf32> to vector<8x32xf32>
    %136 = math.tanh %135 : vector<8x32xf32>
    %137 = vector.extract_strided_slice %122 {offsets = [0, 96], sizes = [8, 32], strides = [1, 1]} : vector<8x128xf32> to vector<8x32xf32>
    %138 = arith.negf %137 : vector<8x32xf32>
    %139 = math.exp %138 : vector<8x32xf32>
    %cst_57 = arith.constant 1.000000e+00 : f32
    %140 = vector.broadcast %cst_57 : f32 to vector<8x32xf32>
    %141 = arith.addf %140, %139 : vector<8x32xf32>
    %142 = arith.divf %140, %141 : vector<8x32xf32>
    %c0_58 = arith.constant 0 : index
    %c0_59 = arith.constant 0 : index
    %143 = vector.load %arg7[%c0_58, %c0_59] : memref<8x32xf32, #tpu.memory_space<vmem>>, vector<8x32xf32>
    %144 = arith.mulf %134, %143 : vector<8x32xf32>
    %145 = arith.mulf %128, %136 : vector<8x32xf32>
    %146 = arith.addf %144, %145 : vector<8x32xf32>
    %147 = math.tanh %146 : vector<8x32xf32>
    %148 = arith.mulf %142, %147 : vector<8x32xf32>
    %c0_60 = arith.constant 0 : index
    %c0_61 = arith.constant 0 : index
    %149 = vector.load %arg6[%c0_60, %c0_61] : memref<8x32xf32, #tpu.memory_space<vmem>>, vector<8x32xf32>
    tpu.vector_store %arg6[%c0_60, %c0_61], %148 {strides = array<i32>} : memref<8x32xf32, #tpu.memory_space<vmem>>, vector<8x32xf32>,
    %c0_62 = arith.constant 0 : index
    %c0_63 = arith.constant 0 : index
    %150 = vector.load %arg7[%c0_62, %c0_63] : memref<8x32xf32, #tpu.memory_space<vmem>>, vector<8x32xf32>
    tpu.vector_store %arg7[%c0_62, %c0_63], %146 {strides = array<i32>} : memref<8x32xf32, #tpu.memory_space<vmem>>, vector<8x32xf32>,
    %c4_i32 = arith.constant 4 : i32
    %c1_i32_64 = arith.constant 1 : i32
    %151 = arith.cmpi eq, %arg0, %c1_i32_64 : i32
    %152 = arith.extui %151 : i1 to i32
    %c0_i32_65 = arith.constant 0 : i32
    %153 = arith.cmpi ne, %152, %c0_i32_65 : i32
    scf.if %153 {
      %c0_66 = arith.constant 0 : index
      %c0_67 = arith.constant 0 : index
      %154 = vector.load %arg6[%c0_66, %c0_67] : memref<8x32xf32, #tpu.memory_space<vmem>>, vector<8x32xf32>
      %155 = arith.truncf %154 : vector<8x32xf32> to vector<8x32xbf16>
      %c0_68 = arith.constant 0 : index
      %c0_69 = arith.constant 0 : index
      %156 = vector.load %arg3[%c0_68, %c0_69] : memref<32x128xbf16, #tpu.memory_space<vmem>>, vector<32x128xbf16>
      %cst_70 = arith.constant dense<0.000000e+00> : vector<8x128xf32>
      %157 = tpu.matmul %155, %156, %cst_70 {dimension_numbers = #tpu.dot_dimension_numbers<[1], [0], [0], [1], [0, 0, 1, 1], [], []>} : vector<8x32xbf16>, vector<32x128xbf16>, vector<8x128xf32> -> vector<8x128xf32>
      %c0_71 = arith.constant 0 : index
      %c0_72 = arith.constant 0 : index
      %158 = vector.load %arg4[%c0_71, %c0_72] : memref<1x128xf32, #tpu.memory_space<vmem>>, vector<1x128xf32>
      %159 = vector.broadcast %158 : vector<1x128xf32> to vector<8x128xf32>
      %160 = arith.addf %157, %159 : vector<8x128xf32>
      %c0_73 = arith.constant 0 : index
      %c0_74 = arith.constant 0 : index
      %161 = vector.load %arg5[%c0_73, %c0_74] : memref<8x128xf32, #tpu.memory_space<vmem>>, vector<8x128xf32>
      tpu.vector_store %arg5[%c0_73, %c0_74], %160 {strides = array<i32>} : memref<8x128xf32, #tpu.memory_space<vmem>>, vector<8x128xf32>,
    } else {
    }
    return
  }
  func.func @transform_0(%arg0: i32) -> (i32, i32, i32) {
    %c0_i32 = arith.constant 0 : i32
    %c0_i32_0 = arith.constant 0 : i32
    %c0_i32_1 = arith.constant 0 : i32
    return %arg0, %c0_i32, %c0_i32_0 : i32, i32, i32
  }
  func.func @transform_1(%arg0: i32) -> (i32, i32) {
    %c0_i32 = arith.constant 0 : i32
    %c0_i32_0 = arith.constant 0 : i32
    %c0_i32_1 = arith.constant 0 : i32
    return %c0_i32, %c0_i32_0 : i32, i32
  }
  func.func @transform_2(%arg0: i32) -> (i32, i32) {
    %c0_i32 = arith.constant 0 : i32
    %c0_i32_0 = arith.constant 0 : i32
    %c0_i32_1 = arith.constant 0 : i32
    return %c0_i32, %c0_i32_0 : i32, i32
  }
  func.func @transform_3(%arg0: i32) -> (i32, i32) {
    %c0_i32 = arith.constant 0 : i32
    %c0_i32_0 = arith.constant 0 : i32
    %c0_i32_1 = arith.constant 0 : i32
    return %c0_i32, %c0_i32_0 : i32, i32
  }
  func.func @transform_4(%arg0: i32) -> (i32, i32) {
    %c0_i32 = arith.constant 0 : i32
    %c0_i32_0 = arith.constant 0 : i32
    %c0_i32_1 = arith.constant 0 : i32
    return %c0_i32, %c0_i32_0 : i32, i32
  }
}

</mosaic_0001>

<llo_original>
// kernel: tpu_custom_call.1
$region0: #{tpu_custom_call.1}
  #allocation0 [shape = 'u32[]', space=smem, size = 0x4, offset = 0x4, fixed_abs, tag = 'smem constant byte address 0x4 - core index']
  #allocation1 [shape = 'u32[72,128]{1,0:T(1,128)}', space=vmem, size = 0x9000, scoped, tag = 'internal scratch']
  #allocation2 [shape = 'f32[8,32]{1,0:T(8,128)}', space=vmem, size = 0x1000, scoped, tag = 'scratch operand']
  #allocation3 [shape = 'f32[8,32]{1,0:T(8,128)}', space=vmem, size = 0x1000, scoped, tag = 'scratch operand']
  %s0 = inlined_call_operand.hbm [shape: bf16[8,8,128], index: 0, kind: input, shape index: {}]
  %s1 = inlined_call_operand.hbm [shape: bf16[32,128], index: 1, kind: input, shape index: {}]
  %s2 = inlined_call_operand.hbm [shape: bf16[32,128], index: 2, kind: input, shape index: {}]
  %s3 = inlined_call_operand.vmem [shape: f32[1,128], index: 3, kind: input, shape index: {}]
  %s4 = inlined_call_operand.hbm [shape: f32[8,128], index: 4, kind: output, shape index: {}]
  %s5 = sld [smem:[#allocation0]]
  $region69: #{tpu_custom_call.1} parent=0
    _
  %s7 = ssub.s32 1, %s5
  %s8 = scalar_select 0, %s7, %s5
  $region1: #{tpu_custom_call.1} parent=0
    #allocation4 [shape = 'u8[16384]{0}', space=vmem, size = 0x4000, scoped, tag = 'input window, operand 0']
    #allocation5 [shape = 's32[2]{0}', space=sflag, size = 0x8, scoped, tag = 'scoped memory for tpu_custom_call.1']
    #allocation6 [shape = 's32[2]{0}', space=sflag, size = 0x8, scoped, tag = 'scoped memory for tpu_custom_call.1']
    #allocation7 [shape = 'u8[8192]{0}', space=vmem, size = 0x2000, scoped, tag = 'input window, operand 1, single buffered']
    #allocation8 [shape = 's32[1]{0}', space=sflag, size = 0x4, scoped, tag = 'scoped memory for tpu_custom_call.1']
    #allocation9 [shape = 'u8[8192]{0}', space=vmem, size = 0x2000, scoped, tag = 'input window, operand 2, single buffered']
    #allocation10 [shape = 'u8[4096]{0}', space=vmem, size = 0x1000, scoped, tag = 'output window, operand 0, single buffered']
    %9 = vsyncpa [#allocation5], 0
    %s10 = scalar_lea.sflag [#allocation5], 1
    %11 = vsyncpa %s10, 0
    %12 = vsyncpa [#allocation8], 0
    %13 = vsyncpa [#allocation6], 0
    loop: start=0, step=1, limit=4
    $region2: #{tpu_custom_call.1} parent=1 // loop_pre_header
      _
    $region3: #{tpu_custom_call.1} parent=1 // loop_header
      %s15 = sphi 0, %s19
      %p16 = scmp.ge.s32.totalorder %s15, 4
      %s25 = sphi 0, %s27
      %s28 = sphi 0, %s25
      %s29 = sphi 0, %s28
      %s45 = sphi 0, %s29
      %s49 = sphi 0, %s49
      %s51 = sphi 0, %s49
      %s52 = sphi 0, %s51
      %s66 = sphi 0, %s52
      %s70 = sphi 0, %s70
      %s72 = sphi 0, %s70
      %s73 = sphi 0, %s72
      %s87 = sphi 0, %s73
      %s91 = sphi 0, %s91
      %s93 = sphi 0, %s91
      %s94 = sphi 0, %s93
      %s108 = sphi 0, %s94
      %s112 = sphi 0, %s112
      %s114 = sphi 0, %s112
      %s115 = sphi 0, %s114
      %s129 = sphi 0, %s115
    $region4: #{tpu_custom_call.1} parent=1 // loop_header_branch
      %18 = sbr.rel (%p16) target = $region8
    $region5: #{tpu_custom_call.1} parent=1 // loop_body
      %s20 = ssub.s32 %s15, 1
      %s21 = ssub.s32 %s15, 2
      %s22 = sadd.s32 %s15, 1
      %s23 = ssub.s32 %s15, %s22
      %p24 = scmp.eq.s32.totalorder %s23, 0
      %s26 = sadd.s32 %s25, 1
      %s27 = scalar_select %p24, %s25, %s26
      %p30 = pneg %p24
      %p31 = scmp.eq.s32.totalorder %s15, 1
      %p32 = por %p30, %p31
      %p33 = scmp.ne.s32.totalorder %s25, %s28
      %p34 = scmp.eq.s32.totalorder %s15, 0
      %p35 = por %p33, %p34
      %p36 = scmp.ne.s32.totalorder %s25, %s28
      %p37 = scmp.eq.s32.totalorder %s20, 1
      %p38 = por %p36, %p37
      %p39 = scmp.ne.s32.totalorder %s28, %s29
      %p40 = scmp.eq.s32.totalorder %s20, 0
      %p41 = por %p39, %p40
      %p42 = scmp.ne.s32.totalorder %s28, %s29
      %p43 = scmp.eq.s32.totalorder %s21, 1
      %p44 = por %p42, %p43
      %p46 = scmp.ne.s32.totalorder %s29, %s45
      %p47 = scmp.eq.s32.totalorder %s21, 0
      %p48 = por %p46, %p47
      %s50 = sadd.s32 %s49, 1
      %p53 = scmp.eq.s32.totalorder %s15, 1
      %p54 = scmp.ne.s32.totalorder %s49, %s51
      %p55 = scmp.eq.s32.totalorder %s15, 0
      %p56 = por %p54, %p55
      %p57 = scmp.ne.s32.totalorder %s49, %s51
      %p58 = scmp.eq.s32.totalorder %s20, 1
      %p59 = por %p57, %p58
      %p60 = scmp.ne.s32.totalorder %s51, %s52
      %p61 = scmp.eq.s32.totalorder %s20, 0
      %p62 = por %p60, %p61
      %p63 = scmp.ne.s32.totalorder %s51, %s52
      %p64 = scmp.eq.s32.totalorder %s21, 1
      %p65 = por %p63, %p64
      %p67 = scmp.ne.s32.totalorder %s52, %s66
      %p68 = scmp.eq.s32.totalorder %s21, 0
      %p69 = por %p67, %p68
      %s71 = sadd.s32 %s70, 1
      %p74 = scmp.eq.s32.totalorder %s15, 1
      %p75 = scmp.ne.s32.totalorder %s70, %s72
      %p76 = scmp.eq.s32.totalorder %s15, 0
      %p77 = por %p75, %p76
      %p78 = scmp.ne.s32.totalorder %s70, %s72
      %p79 = scmp.eq.s32.totalorder %s20, 1
      %p80 = por %p78, %p79
      %p81 = scmp.ne.s32.totalorder %s72, %s73
      %p82 = scmp.eq.s32.totalorder %s20, 0
      %p83 = por %p81, %p82
      %p84 = scmp.ne.s32.totalorder %s72, %s73
      %p85 = scmp.eq.s32.totalorder %s21, 1
      %p86 = por %p84, %p85
      %p88 = scmp.ne.s32.totalorder %s73, %s87
      %p89 = scmp.eq.s32.totalorder %s21, 0
      %p90 = por %p88, %p89
      %s92 = sadd.s32 %s91, 1
      %p95 = scmp.eq.s32.totalorder %s15, 1
      %p96 = scmp.ne.s32.totalorder %s91, %s93
      %p97 = scmp.eq.s32.totalorder %s15, 0
      %p98 = por %p96, %p97
      %p99 = scmp.ne.s32.totalorder %s91, %s93
      %p100 = scmp.eq.s32.totalorder %s20, 1
      %p101 = por %p99, %p100
      %p102 = scmp.ne.s32.totalorder %s93, %s94
      %p103 = scmp.eq.s32.totalorder %s20, 0
      %p104 = por %p102, %p103
      %p105 = scmp.ne.s32.totalorder %s93, %s94
      %p106 = scmp.eq.s32.totalorder %s21, 1
      %p107 = por %p105, %p106
      %p109 = scmp.ne.s32.totalorder %s94, %s108
      %p110 = scmp.eq.s32.totalorder %s21, 0
      %p111 = por %p109, %p110
      %s113 = sadd.s32 %s112, 1
      %p116 = scmp.eq.s32.totalorder %s15, 1
      %p117 = scmp.ne.s32.totalorder %s112, %s114
      %p118 = scmp.eq.s32.totalorder %s15, 0
      %p119 = por %p117, %p118
      %p120 = scmp.ne.s32.totalorder %s112, %s114
      %p121 = scmp.eq.s32.totalorder %s20, 1
      %p122 = por %p120, %p121
      %p123 = scmp.ne.s32.totalorder %s114, %s115
      %p124 = scmp.eq.s32.totalorder %s20, 0
      %p125 = por %p123, %p124
      %p126 = scmp.ne.s32.totalorder %s114, %s115
      %p127 = scmp.eq.s32.totalorder %s21, 1
      %p128 = por %p126, %p127
      %p130 = scmp.ne.s32.totalorder %s115, %s129
      %p131 = scmp.eq.s32.totalorder %s21, 0
      %p132 = por %p130, %p131
      %p133 = scmp.le.s32.totalorder 1, %s15
      %p134 = scmp.lt.s32.totalorder %s15, 3
      %p135 = pnand %p133, %p134
      %p136 = pneg %p135
      // Predicated region
      $region9: #{tpu_custom_call.1} parent=5 // pred_check
        _
      $region10: #{tpu_custom_call.1} parent=5 // pred_check_branch
        %138 = sbr.rel (%p135) target = $region12
      $region11: #{tpu_custom_call.1} parent=5 // pred_region
        %s139 = ssub.s32 %s15, 1
        // Predicated region
        $region13: #{tpu_custom_call.1} parent=11 // pred_check
          %p140 = pneg %p62
        $region14: #{tpu_custom_call.1} parent=11 // pred_check_branch
          %142 = sbr.rel (%p140) target = $region16
        $region15: #{tpu_custom_call.1} parent=11 // pred_region
          %144 = vsyncadd [#allocation8], 0
          %s145 = sshll.u32 %s1, 4
          %s146 = int_to_ptr.hbm [resolvable:$true] %s145
          %s147 = sshll.u32 [#allocation7], 4
          %s148 = int_to_ptr.vmem [resolvable:$true] %s147
          %153 = dma.hbm_to_vmem [thread:$0]  %s146, 256, %s148, [#allocation8], 64, 64, 4
        $region16: #{tpu_custom_call.1} parent=11 // pred_fallthru
          _
        // Predicated region
        $region17: #{tpu_custom_call.1} parent=11 // pred_check
          %p154 = pneg %p83
        $region18: #{tpu_custom_call.1} parent=11 // pred_check_branch
          %156 = sbr.rel (%p154) target = $region20
        $region19: #{tpu_custom_call.1} parent=11 // pred_region
          %158 = vsyncadd [#allocation8], 0
          %s159 = sshll.u32 %s2, 4
          %s160 = int_to_ptr.hbm [resolvable:$true] %s159
          %s161 = sshll.u32 [#allocation9], 4
          %s162 = int_to_ptr.vmem [resolvable:$true] %s161
          %167 = dma.hbm_to_vmem [thread:$0]  %s160, 256, %s162, [#allocation8], 64, 64, 4
        $region20: #{tpu_custom_call.1} parent=11 // pred_fallthru
          _
        // Predicated region
        $region21: #{tpu_custom_call.1} parent=11 // pred_check
          %p168 = pneg %p104
        $region22: #{tpu_custom_call.1} parent=11 // pred_check_branch
          %170 = sbr.rel (%p168) target = $region24
        $region23: #{tpu_custom_call.1} parent=11 // pred_region
          _
        $region24: #{tpu_custom_call.1} parent=11 // pred_fallthru
          _
      $region12: #{tpu_custom_call.1} parent=5 // pred_fallthru
        _
      %p171 = scmp.lt.s32.totalorder %s15, 2
      // Predicated region
      $region25: #{tpu_custom_call.1} parent=5 // pred_check
        %p172 = pneg %p171
      $region26: #{tpu_custom_call.1} parent=5 // pred_check_branch
        %174 = sbr.rel (%p172) target = $region28
      $region27: #{tpu_custom_call.1} parent=5 // pred_region
        // Predicated region
        $region29: #{tpu_custom_call.1} parent=27 // pred_check
          %p175 = pneg %p35
        $region30: #{tpu_custom_call.1} parent=27 // pred_check_branch
          %177 = sbr.rel (%p175) target = $region32
        $region31: #{tpu_custom_call.1} parent=27 // pred_region
          %s178 = sand.u32 %s25, 1
          %s179 = scalar_lea.sflag [#allocation5], %s178
          %s180 = sand.u32 %s25, 1
          %s181 = smul.addr %s180, 16
          %s182 = scalar_lea.vmem [#allocation4], %s181
          %s183 = smul.u32 4, %s15
          %185 = vsyncadd %s179, 0
          %s186 = smul.addr %s183, 4
          %s187 = scalar_lea.hbm %s0, %s186
          %s188 = sshll.u32 %s187, 4
          %s189 = int_to_ptr.hbm [resolvable:$true] %s188
          %s190 = sshll.u32 %s182, 4
          %s191 = int_to_ptr.vmem [resolvable:$true] %s190
          %196 = dma.hbm_to_vmem [thread:$0]  %s189, 256, %s191, %s179, 64, 64, 4
        $region32: #{tpu_custom_call.1} parent=27 // pred_fallthru
          _
      $region28: #{tpu_custom_call.1} parent=5 // pred_fallthru
        _
      %p197 = scmp.le.s32.totalorder 1, %s15
      %p198 = scmp.lt.s32.totalorder %s15, 3
      %p199 = pnand %p197, %p198
      %p200 = pneg %p199
      // Predicated region
      $region33: #{tpu_custom_call.1} parent=5 // pred_check
        _
      $region34: #{tpu_custom_call.1} parent=5 // pred_check_branch
        %202 = sbr.rel (%p199) target = $region36
      $region35: #{tpu_custom_call.1} parent=5 // pred_region
        %s203 = ssub.s32 %s15, 1
        %s204 = sand.u32 %s28, 1
        %s205 = scalar_lea.sflag [#allocation5], %s204
        %s206 = sand.u32 %s28, 1
        %s207 = smul.addr %s206, 16
        %s208 = scalar_lea.vmem [#allocation4], %s207
        // Predicated region
        $region37: #{tpu_custom_call.1} parent=35 // pred_check
          %p209 = pneg %p41
        $region38: #{tpu_custom_call.1} parent=35 // pred_check_branch
          %211 = sbr.rel (%p209) target = $region40
        $region39: #{tpu_custom_call.1} parent=35 // pred_region
          %213 = dma.done %s205, 256
        $region40: #{tpu_custom_call.1} parent=35 // pred_fallthru
          _
        // Predicated region
        $region41: #{tpu_custom_call.1} parent=35 // pred_check
          %p214 = pneg %p62
        $region42: #{tpu_custom_call.1} parent=35 // pred_check_branch
          %216 = sbr.rel (%p214) target = $region44
        $region43: #{tpu_custom_call.1} parent=35 // pred_region
          %218 = dma.done [#allocation8], 256
        $region44: #{tpu_custom_call.1} parent=35 // pred_fallthru
          _
        // Predicated region
        $region45: #{tpu_custom_call.1} parent=35 // pred_check
          %p219 = pneg %p83
        $region46: #{tpu_custom_call.1} parent=35 // pred_check_branch
          %221 = sbr.rel (%p219) target = $region48
        $region47: #{tpu_custom_call.1} parent=35 // pred_region
          %223 = dma.done [#allocation8], 256
        $region48: #{tpu_custom_call.1} parent=35 // pred_fallthru
          _
        %s224 = sand.u32 %s28, 1
        %s225 = scalar_lea.sflag [#allocation5], %s224
        %s226 = sand.u32 %s28, 1
        %s227 = smul.addr %s226, 16
        %s228 = scalar_lea.vmem [#allocation4], %s227
        %p229 = pneg %p41
        %p230 = pneg %p38
        %p231 = pneg %p62
        %p232 = pneg %p59
        %p233 = pneg %p83
        %p234 = pneg %p80
        %p235 = pneg %p104
        %p236 = pneg %p101
        %p237 = pneg %p125
        %p238 = pneg %p122
        %s239 = smul.u32 4, %s20
        %p241 = scmp.eq.s32.totalorder %s20, 0
        // Predicated region
        $region49: #{tpu_custom_call.1} parent=35 // pred_check
          %p242 = pneg %p241
        $region50: #{tpu_custom_call.1} parent=35 // pred_check_branch
          %244 = sbr.rel (%p242) target = $region52
        $region51: #{tpu_custom_call.1} parent=35 // pred_region
          %vm245 = vcmask 261120
          %246 = vst.msk [vmem:[#allocation2] sm:$0xff] %vm245, 0.0
          %247 = vst.msk [vmem:[#allocation3] sm:$0xff] %vm245, 0.0
        $region52: #{tpu_custom_call.1} parent=35 // pred_fallthru
          _
        %v248 = vld [vmem:[%s208] sm:$0xf]
        %v249 = vunpack.c.l.bf16 %v248
        %v250 = vld [vmem:[#allocation2] sm:$0xff]
        %v251 = vpack.c.bf16 %v250, %v250
        %v252 = vld [vmem:[#allocation7] sm:$0xf]
        %v253 = vld [vmem:[#allocation7 + $0x4] sm:$0xf]
        %v254 = vld [vmem:[#allocation7 + $0x8] sm:$0xf]
        %v255 = vld [vmem:[#allocation7 + $0xc] sm:$0xf]
        %v260 = vunpack.c.l.b16 %v252
        %v261 = vunpack.c.l.b16 %v253
        %v262 = vunpack.c.l.b16 %v254
        %v263 = vunpack.c.l.b16 %v255
        %v264 = vpack.c.b16 %v261, %v260
        %v265 = vpack.c.b16 %v263, %v262
        %vm268 = vcmask 261120
        %v270 = vsel %vm268, %v251, 0
        %272 = vmatpush.bf16.msra.mxu0 0
        %273 = vmatpush.bf16.msra.mxu0 0
        %274 = vmatpush.bf16.msra.mxu0 0
        %275 = vmatpush.bf16.msra.mxu0 0
        %276 = vmatpush.bf16.msra.mxu0 0
        %277 = vmatpush.bf16.msra.mxu0 0
        %278 = vmatpush.bf16.msra.mxu0 %v265
        %279 = vmatpush.bf16.msra.mxu0 %v264
        %280 = vmatmul.bf16.gmra.mxu0 %v270
        %v281 = vpop.f32.mrf.mxu0
        %v282 = vadd.f32 0.0, %v281
        %v283 = vpop.f32.mrf.mxu0
        %284 = vdwg.mxu0
        %v285 = vadd.f32 %v249, %v282
        %v286 = vxor.u32 %v285, 2147483648
        %v287 = vmul.f32 %v286, 1.442695
        %v288 = vpow.pop %v287
        %v289 = vadd.f32 %v288, 1.0
        %v290 = vrcp.pop %v289
        %v291 = vmul.f32 %v289, %v290
        %v292 = vsub.f32 1.0, %v291
        %v293 = vmul.f32 %v290, %v292
        %v294 = vadd.f32 %v290, %v293
        %vm295 = vweird.f32 %v289
        %vm296 = vweird.f32 %v290
        %vm297 = vmor %vm295, %vm296
        %v298 = vsel %vm297, %v290, %v294
        %v299 = vand.u32 2147483647, %v289
        %vm300 = vcmp.eq.f32.partialorder %v299, 8.507059e+37
        %v301 = vand.u32 %v289, 2147483648
        %v302 = vor.u32 1.1754944e-38, %v301
        %v303 = vsel %vm300, %v302, %v298
        %v304 = vmul.f32 1.0, %v303
        %v305 = vtanh.pop %v285
        %v306 = vld [vmem:[#allocation3] sm:$0xff]
        %308 = vrot.lane.b32.xlu0 %v306, 32
        %v309 = vpop.permute.xlu0 %308
        %v311 = vmul.f32 %v304, %v309
        %313 = vrot.lane.b32.xlu0 %v305, 64
        %v314 = vpop.permute.xlu0 %313
        %v316 = vmul.f32 %v304, %v314
        %318 = vrot.lane.b32.xlu0 %v316, 32
        %v319 = vpop.permute.xlu0 %318
        %v321 = vadd.f32 %v311, %v319
        %v322 = vtanh.pop %v321
        %324 = vrot.lane.b32.xlu0 %v322, 64
        %v325 = vpop.permute.xlu0 %324
        %v327 = vmul.f32 %v304, %v325
        %329 = vrot.lane.b32.xlu0 %v327, 32
        %v330 = vpop.permute.xlu0 %329
        %332 = vst.msk [vmem:[#allocation2] sm:$0xff] %vm268, %v330
        %334 = vrot.lane.b32.xlu0 %v321, 96
        %v335 = vpop.permute.xlu0 %334
        %337 = vst.msk [vmem:[#allocation3] sm:$0xff] %vm268, %v335
        %s338 = scalar_lea.vmem %s208, 4 [#allocation4]
        %v339 = vld [vmem:[%s338] sm:$0xf]
        %v340 = vunpack.c.l.bf16 %v339
        %v341 = vld [vmem:[#allocation2] sm:$0xff]
        %v342 = vpack.c.bf16 %v341, %v341
        %v343 = vld [vmem:[#allocation7] sm:$0xf]
        %v344 = vld [vmem:[#allocation7 + $0x4] sm:$0xf]
        %v345 = vld [vmem:[#allocation7 + $0x8] sm:$0xf]
        %v346 = vld [vmem:[#allocation7 + $0xc] sm:$0xf]
        %v351 = vunpack.c.l.b16 %v343
        %v352 = vunpack.c.l.b16 %v344
        %v353 = vunpack.c.l.b16 %v345
        %v354 = vunpack.c.l.b16 %v346
        %v355 = vpack.c.b16 %v352, %v351
        %v356 = vpack.c.b16 %v354, %v353
        %v360 = vsel %vm268, %v342, 0
        %362 = vmatpush.bf16.msra.mxu0 0
        %363 = vmatpush.bf16.msra.mxu0 0
        %364 = vmatpush.bf16.msra.mxu0 0
        %365 = vmatpush.bf16.msra.mxu0 0
        %366 = vmatpush.bf16.msra.mxu0 0
        %367 = vmatpush.bf16.msra.mxu0 0
        %368 = vmatpush.bf16.msra.mxu0 %v356
        %369 = vmatpush.bf16.msra.mxu0 %v355
        %370 = vmatmul.bf16.gmra.mxu0 %v360
        %v371 = vpop.f32.mrf.mxu0
        %v372 = vadd.f32 0.0, %v371
        %v373 = vpop.f32.mrf.mxu0
        %374 = vdwg.mxu0
        %v375 = vadd.f32 %v340, %v372
        %v376 = vxor.u32 %v375, 2147483648
        %v377 = vmul.f32 %v376, 1.442695
        %v378 = vpow.pop %v377
        %v379 = vadd.f32 %v378, 1.0
        %v380 = vrcp.pop %v379
        %v381 = vmul.f32 %v379, %v380
        %v382 = vsub.f32 1.0, %v381
        %v383 = vmul.f32 %v380, %v382
        %v384 = vadd.f32 %v380, %v383
        %vm385 = vweird.f32 %v379
        %vm386 = vweird.f32 %v380
        %vm387 = vmor %vm385, %vm386
        %v388 = vsel %vm387, %v380, %v384
        %v389 = vand.u32 2147483647, %v379
        %vm390 = vcmp.eq.f32.partialorder %v389, 8.507059e+37
        %v391 = vand.u32 %v379, 2147483648
        %v392 = vor.u32 1.1754944e-38, %v391
        %v393 = vsel %vm390, %v392, %v388
        %v394 = vmul.f32 1.0, %v393
        %v395 = vtanh.pop %v375
        %v396 = vld [vmem:[#allocation3] sm:$0xff]
        %398 = vrot.lane.b32.xlu0 %v396, 32
        %v399 = vpop.permute.xlu0 %398
        %v401 = vmul.f32 %v394, %v399
        %403 = vrot.lane.b32.xlu0 %v395, 64
        %v404 = vpop.permute.xlu0 %403
        %v406 = vmul.f32 %v394, %v404
        %408 = vrot.lane.b32.xlu0 %v406, 32
        %v409 = vpop.permute.xlu0 %408
        %v411 = vadd.f32 %v401, %v409
        %v412 = vtanh.pop %v411
        %414 = vrot.lane.b32.xlu0 %v412, 64
        %v415 = vpop.permute.xlu0 %414
        %v417 = vmul.f32 %v394, %v415
        %419 = vrot.lane.b32.xlu0 %v417, 32
        %v420 = vpop.permute.xlu0 %419
        %422 = vst.msk [vmem:[#allocation2] sm:$0xff] %vm268, %v420
        %424 = vrot.lane.b32.xlu0 %v411, 96
        %v425 = vpop.permute.xlu0 %424
        %427 = vst.msk [vmem:[#allocation3] sm:$0xff] %vm268, %v425
        %s428 = scalar_lea.vmem %s208, 8 [#allocation4]
        %v429 = vld [vmem:[%s428] sm:$0xf]
        %v430 = vunpack.c.l.bf16 %v429
        %v431 = vld [vmem:[#allocation2] sm:$0xff]
        %v432 = vpack.c.bf16 %v431, %v431
        %v433 = vld [vmem:[#allocation7] sm:$0xf]
        %v434 = vld [vmem:[#allocation7 + $0x4] sm:$0xf]
        %v435 = vld [vmem:[#allocation7 + $0x8] sm:$0xf]
        %v436 = vld [vmem:[#allocation7 + $0xc] sm:$0xf]
        %v441 = vunpack.c.l.b16 %v433
        %v442 = vunpack.c.l.b16 %v434
        %v443 = vunpack.c.l.b16 %v435
        %v444 = vunpack.c.l.b16 %v436
        %v445 = vpack.c.b16 %v442, %v441
        %v446 = vpack.c.b16 %v444, %v443
        %v450 = vsel %vm268, %v432, 0
        %452 = vmatpush.bf16.msra.mxu0 0
        %453 = vmatpush.bf16.msra.mxu0 0
        %454 = vmatpush.bf16.msra.mxu0 0
        %455 = vmatpush.bf16.msra.mxu0 0
        %456 = vmatpush.bf16.msra.mxu0 0
        %457 = vmatpush.bf16.msra.mxu0 0
        %458 = vmatpush.bf16.msra.mxu0 %v446
        %459 = vmatpush.bf16.msra.mxu0 %v445
        %460 = vmatmul.bf16.gmra.mxu0 %v450
        %v461 = vpop.f32.mrf.mxu0
        %v462 = vadd.f32 0.0, %v461
        %v463 = vpop.f32.mrf.mxu0
        %464 = vdwg.mxu0
        %v465 = vadd.f32 %v430, %v462
        %v466 = vxor.u32 %v465, 2147483648
        %v467 = vmul.f32 %v466, 1.442695
        %v468 = vpow.pop %v467
        %v469 = vadd.f32 %v468, 1.0
        %v470 = vrcp.pop %v469
        %v471 = vmul.f32 %v469, %v470
        %v472 = vsub.f32 1.0, %v471
        %v473 = vmul.f32 %v470, %v472
        %v474 = vadd.f32 %v470, %v473
        %vm475 = vweird.f32 %v469
        %vm476 = vweird.f32 %v470
        %vm477 = vmor %vm475, %vm476
        %v478 = vsel %vm477, %v470, %v474
        %v479 = vand.u32 2147483647, %v469
        %vm480 = vcmp.eq.f32.partialorder %v479, 8.507059e+37
        %v481 = vand.u32 %v469, 2147483648
        %v482 = vor.u32 1.1754944e-38, %v481
        %v483 = vsel %vm480, %v482, %v478
        %v484 = vmul.f32 1.0, %v483
        %v485 = vtanh.pop %v465
        %v486 = vld [vmem:[#allocation3] sm:$0xff]
        %488 = vrot.lane.b32.xlu0 %v486, 32
        %v489 = vpop.permute.xlu0 %488
        %v491 = vmul.f32 %v484, %v489
        %493 = vrot.lane.b32.xlu0 %v485, 64
        %v494 = vpop.permute.xlu0 %493
        %v496 = vmul.f32 %v484, %v494
        %498 = vrot.lane.b32.xlu0 %v496, 32
        %v499 = vpop.permute.xlu0 %498
        %v501 = vadd.f32 %v491, %v499
        %v502 = vtanh.pop %v501
        %504 = vrot.lane.b32.xlu0 %v502, 64
        %v505 = vpop.permute.xlu0 %504
        %v507 = vmul.f32 %v484, %v505
        %509 = vrot.lane.b32.xlu0 %v507, 32
        %v510 = vpop.permute.xlu0 %509
        %512 = vst.msk [vmem:[#allocation2] sm:$0xff] %vm268, %v510
        %514 = vrot.lane.b32.xlu0 %v501, 96
        %v515 = vpop.permute.xlu0 %514
        %517 = vst.msk [vmem:[#allocation3] sm:$0xff] %vm268, %v515
        %s518 = scalar_lea.vmem %s208, 12 [#allocation4]
        %v519 = vld [vmem:[%s518] sm:$0xf]
        %v520 = vunpack.c.l.bf16 %v519
        %v521 = vld [vmem:[#allocation2] sm:$0xff]
        %v522 = vpack.c.bf16 %v521, %v521
        %v523 = vld [vmem:[#allocation7] sm:$0xf]
        %v524 = vld [vmem:[#allocation7 + $0x4] sm:$0xf]
        %v525 = vld [vmem:[#allocation7 + $0x8] sm:$0xf]
        %v526 = vld [vmem:[#allocation7 + $0xc] sm:$0xf]
        %v531 = vunpack.c.l.b16 %v523
        %v532 = vunpack.c.l.b16 %v524
        %v533 = vunpack.c.l.b16 %v525
        %v534 = vunpack.c.l.b16 %v526
        %v535 = vpack.c.b16 %v532, %v531
        %v536 = vpack.c.b16 %v534, %v533
        %v540 = vsel %vm268, %v522, 0
        %542 = vmatpush.bf16.msra.mxu0 0
        %543 = vmatpush.bf16.msra.mxu0 0
        %544 = vmatpush.bf16.msra.mxu0 0
        %545 = vmatpush.bf16.msra.mxu0 0
        %546 = vmatpush.bf16.msra.mxu0 0
        %547 = vmatpush.bf16.msra.mxu0 0
        %548 = vmatpush.bf16.msra.mxu0 %v536
        %549 = vmatpush.bf16.msra.mxu0 %v535
        %550 = vmatmul.bf16.gmra.mxu0 %v540
        %v551 = vpop.f32.mrf.mxu0
        %v552 = vadd.f32 0.0, %v551
        %v553 = vpop.f32.mrf.mxu0
        %554 = vdwg.mxu0
        %v555 = vadd.f32 %v520, %v552
        %v556 = vxor.u32 %v555, 2147483648
        %v557 = vmul.f32 %v556, 1.442695
        %v558 = vpow.pop %v557
        %v559 = vadd.f32 %v558, 1.0
        %v560 = vrcp.pop %v559
        %v561 = vmul.f32 %v559, %v560
        %v562 = vsub.f32 1.0, %v561
        %v563 = vmul.f32 %v560, %v562
        %v564 = vadd.f32 %v560, %v563
        %vm565 = vweird.f32 %v559
        %vm566 = vweird.f32 %v560
        %vm567 = vmor %vm565, %vm566
        %v568 = vsel %vm567, %v560, %v564
        %v569 = vand.u32 2147483647, %v559
        %vm570 = vcmp.eq.f32.partialorder %v569, 8.507059e+37
        %v571 = vand.u32 %v559, 2147483648
        %v572 = vor.u32 1.1754944e-38, %v571
        %v573 = vsel %vm570, %v572, %v568
        %v574 = vmul.f32 1.0, %v573
        %v575 = vtanh.pop %v555
        %v576 = vld [vmem:[#allocation3] sm:$0xff]
        %578 = vrot.lane.b32.xlu0 %v576, 32
        %v579 = vpop.permute.xlu0 %578
        %v581 = vmul.f32 %v574, %v579
        %583 = vrot.lane.b32.xlu0 %v575, 64
        %v584 = vpop.permute.xlu0 %583
        %v586 = vmul.f32 %v574, %v584
        %588 = vrot.lane.b32.xlu0 %v586, 32
        %v589 = vpop.permute.xlu0 %588
        %v591 = vadd.f32 %v581, %v589
        %v592 = vtanh.pop %v591
        %594 = vrot.lane.b32.xlu0 %v592, 64
        %v595 = vpop.permute.xlu0 %594
        %v597 = vmul.f32 %v574, %v595
        %599 = vrot.lane.b32.xlu0 %v597, 32
        %v600 = vpop.permute.xlu0 %599
        %602 = vst.msk [vmem:[#allocation2] sm:$0xff] %vm268, %v600
        %604 = vrot.lane.b32.xlu0 %v591, 96
        %v605 = vpop.permute.xlu0 %604
        %607 = vst.msk [vmem:[#allocation3] sm:$0xff] %vm268, %v605
        %p608 = scmp.eq.s32.totalorder %s20, 1
        // Predicated region
        $region53: #{tpu_custom_call.1} parent=35 // pred_check
          %p609 = pneg %p608
        $region54: #{tpu_custom_call.1} parent=35 // pred_check_branch
          %611 = sbr.rel (%p609) target = $region56
        $region55: #{tpu_custom_call.1} parent=35 // pred_region
          %v612 = vld [vmem:[#allocation2] sm:$0xff]
          %v613 = vpack.c.bf16 %v612, %v612
          %v614 = vld [vmem:[#allocation9] sm:$0xf]
          %v615 = vld [vmem:[#allocation9 + $0x4] sm:$0xf]
          %v616 = vld [vmem:[#allocation9 + $0x8] sm:$0xf]
          %v617 = vld [vmem:[#allocation9 + $0xc] sm:$0xf]
          %v618 = vld [vmem:[%s3] sm:$0x1]
          %v620 = vperm.slane %v618, 0
          %v626 = vunpack.c.l.b16 %v614
          %v627 = vunpack.c.l.b16 %v615
          %v628 = vunpack.c.l.b16 %v616
          %v629 = vunpack.c.l.b16 %v617
          %v630 = vpack.c.b16 %v627, %v626
          %v631 = vpack.c.b16 %v629, %v628
          %v635 = vsel %vm268, %v613, 0
          %637 = vmatpush.bf16.msra.mxu0 0
          %638 = vmatpush.bf16.msra.mxu0 0
          %639 = vmatpush.bf16.msra.mxu0 0
          %640 = vmatpush.bf16.msra.mxu0 0
          %641 = vmatpush.bf16.msra.mxu0 0
          %642 = vmatpush.bf16.msra.mxu0 0
          %643 = vmatpush.bf16.msra.mxu0 %v631
          %644 = vmatpush.bf16.msra.mxu0 %v630
          %645 = vmatmul.bf16.gmra.mxu0 %v635
          %v646 = vpop.f32.mrf.mxu0
          %v647 = vadd.f32 %v620, %v646
          %v648 = vpop.f32.mrf.mxu0
          %649 = vdwg.mxu0
          %650 = vst [vmem:[#allocation10] sm:$0xff] %v647
        $region56: #{tpu_custom_call.1} parent=35 // pred_fallthru
          _
        // Predicated region
        $region57: #{tpu_custom_call.1} parent=35 // pred_check
          %p651 = pneg %p122
        $region58: #{tpu_custom_call.1} parent=35 // pred_check_branch
          %653 = sbr.rel (%p651) target = $region60
        $region59: #{tpu_custom_call.1} parent=35 // pred_region
          %655 = vsyncadd [#allocation6], 0
          %s657 = sshll.u32 [#allocation10], 4
          %s658 = int_to_ptr.vmem [resolvable:$true] %s657
          %s659 = sshll.u32 %s4, 4
          %s660 = int_to_ptr.hbm [resolvable:$true] %s659
          %662 = dma.vmem_to_hbm [thread:$0]  %s658, 128, %s660, [#allocation6]
        $region60: #{tpu_custom_call.1} parent=35 // pred_fallthru
          _
        // Predicated region
        $region61: #{tpu_custom_call.1} parent=35 // pred_check
          %p663 = pneg %p122
        $region62: #{tpu_custom_call.1} parent=35 // pred_check_branch
          %665 = sbr.rel (%p663) target = $region64
        $region63: #{tpu_custom_call.1} parent=35 // pred_region
          %667 = dma.done [#allocation6], 128
        $region64: #{tpu_custom_call.1} parent=35 // pred_fallthru
          _
      $region36: #{tpu_custom_call.1} parent=5 // pred_fallthru
        _
      %p668 = scmp.le.s32.totalorder 2, %s15
      // Predicated region
      $region65: #{tpu_custom_call.1} parent=5 // pred_check
        %p669 = pneg %p668
      $region66: #{tpu_custom_call.1} parent=5 // pred_check_branch
        %671 = sbr.rel (%p669) target = $region68
      $region67: #{tpu_custom_call.1} parent=5 // pred_region
        %s672 = ssub.s32 %s15, 2
      $region68: #{tpu_custom_call.1} parent=5 // pred_fallthru
        _
    $region6: #{tpu_custom_call.1} parent=1 // loop_footer
      %s19 = sadd.s32 1, %s15
    $region7: #{tpu_custom_call.1} parent=1 // loop_footer_branch
      %14 = sbr.rel target = $region3
    $region8: #{tpu_custom_call.1} parent=1 // loop_exit
      _
    %673 = vsyncpa [#allocation5], 1
    %s674 = scalar_lea.sflag [#allocation5], 1
    %675 = vsyncpa %s674, 1
    %676 = vsyncpa [#allocation8], 1
    %677 = vsyncpa [#allocation6], 1
    %s678 = scalar_lea.sflag [#allocation6], 1
    %679 = vsyncpa %s678, 1

</llo_original>
